<compile_context>
chip_gen: v5e
topology: v5e:2x2
jax: 0.10.0
libtpu: 0.0.40
codegen_flags: <defaults>
</compile_context>

<pallas_src>
import functools

import jax
import jax.numpy as jnp
from jax.experimental import pallas as pl
from jax.experimental.pallas import tpu as pltpu


def _ce_sum_kernel(preds_ref, tgt_ref, out_ref, acc_ref, *, nbi, tb, batch, need_mask):
    """One grid step = one (granularity g, outer batch chunk o, inner batch tile i).

    preds_ref : VMEM (1, TB, C)    logits tile (input dtype; upcast to f32 in-kernel)
    tgt_ref   : VMEM (TB, 1)       int32 target class ids for this batch tile
    out_ref   : VMEM (1, 1, 1, 1)  f32 partial CE *sum* for (g, o); resident across i
    acc_ref   : VMEM (1, 1)        f32 scratch accumulator
    """
    i = pl.program_id(2)

    @pl.when(i == 0)
    def _init():
        acc_ref[...] = jnp.zeros_like(acc_ref)

    # TODO(synk): on v6e/v7x with bf16 logits the max / compare / select below could stay
    # in bf16 (VPU/EUP are bf16-capable) to cut VALU work; kept in f32 for v5e portability.
    x = preds_ref[0].astype(jnp.float32)                       # (TB, C) f32 math
    m = jnp.max(x, axis=-1, keepdims=True)                     # (TB, 1)
    xm = x - m                                                 # shared by exp pass & gather
    cls = jax.lax.broadcasted_iota(jnp.int32, xm.shape, 1)     # (TB, C) class ids
    # Shifted target logit via iota-compare mask (no one-hot ever materialized in HBM).
    tgt_xm = jnp.sum(jnp.where(cls == tgt_ref[...], xm, 0.0), axis=-1, keepdims=True)
    se = jnp.sum(jnp.exp(xm), axis=-1, keepdims=True)          # (TB, 1)
    ce = jnp.log(se) - tgt_xm                                  # per-row CE (the m cancels)

    if need_mask:
        # Remainder tile: rows >= batch are garbage (OOB read); zero their contribution.
        off = (pl.program_id(1) * nbi + i) * tb
        row = off + jax.lax.broadcasted_iota(jnp.int32, ce.shape, 0)
        ce = jnp.where(row < batch, ce, 0.0)

    acc_ref[...] += jnp.sum(ce)

    @pl.when(i == pl.num_programs(2) - 1)
    def _finalize():
        out_ref[0, 0] = acc_ref[...]


def _vmem_budget():
    """Generation-aware (tile_budget_bytes, vmem_limit_bytes)."""
    mib = 1024 * 1024
    try:
        cap = pltpu.get_tpu_info().vmem_capacity_bytes
    except Exception:
        cap = 64 * mib                       # conservative default (v7x-sized VMEM)
    if cap >= 100 * mib:                     # v5e / v6e: 128 MiB physical VMEM
        return 40 * mib, 64 * mib
    return 26 * mib, 44 * mib                # v7x: 64 MiB physical -> leave headroom


def _pick_tile_b(batch, num_classes, in_itemsize, budget_bytes, row_align,
                 max_tile_rows=2048):
    """Largest aligned batch tile whose double-buffered logits tile + f32 upcast temps fit
    the budget.  Prefers an exact divisor of the batch; otherwise the remainder tile is
    masked in-kernel (never an unbounded full-batch fallback)."""
    if batch <= row_align:
        return batch                         # full-dim block is always legal
    # Per batch-row VMEM bytes: double-buffered logits rows + f32 intermediates
    # (xm and exp(xm)) + double-buffered (tb, 1) target block rows.
    bytes_per_row = num_classes * (2 * in_itemsize + 2 * 4) + 2 * 128 * 4
    fit = int(budget_bytes // bytes_per_row)
    max_rows = max(row_align, (fit // row_align) * row_align)
    max_rows = min(max_rows, (batch // row_align) * row_align, max_tile_rows)
    for cand in range(max_rows, row_align - 1, -row_align):
        if batch % cand == 0:
            return cand                      # exact divisor: no masked remainder
    return max_rows                          # masked remainder rows handled in-kernel


def _ce_sums_pallas(preds3d, targets2d):
    """Per-granularity CE *sums* over the batch for a (G, B, C) logits array -> (G,)."""
    G, B, C = preds3d.shape
    in_itemsize = jnp.dtype(preds3d.dtype).itemsize
    row_align = {1: 32, 2: 16}.get(in_itemsize, 8)       # native sublane packing
    tile_budget, vmem_limit = _vmem_budget()
    tb = _pick_tile_b(B, C, in_itemsize, tile_budget, row_align)
    nb = pl.cdiv(B, tb)                                  # total batch tiles
    need_mask = (B % tb) != 0
    # v7x megacore: second *parallel* batch-chunk axis keeps both TensorCores busy even
    # when G == 1 (the list-of-preds path); harmless on single-TC v5e/v6e.
    nbo = 2 if (nb >= 2 and nb % 2 == 0) else 1
    nbi = nb // nbo

    spec_kwargs = {}
    if tb <= 4 * row_align and nbi >= 3:
        # Vocab-scale C forced a minimal tile: deepen the logits pipeline to hide DMA.
        spec_kwargs["pipeline_mode"] = pl.Buffered(3)
    logits_spec = pl.BlockSpec((1, tb, C), lambda g, o, i: (g, o * nbi + i, 0),
                               **spec_kwargs)

    out = pl.pallas_call(
        functools.partial(_ce_sum_kernel, nbi=nbi, tb=tb, batch=B, need_mask=need_mask),
        out_shape=jax.ShapeDtypeStruct((G, nbo, 1, 1), jnp.float32),
        grid_spec=pltpu.PrefetchScalarGridSpec(
            num_scalar_prefetch=0,
            grid=(G, nbo, nbi),
            in_specs=[
                logits_spec,                                           # logits tile
                pl.BlockSpec((tb, 1), lambda g, o, i: (o * nbi + i, 0)),  # int32 targets
            ],
            out_specs=pl.BlockSpec((1, 1, 1, 1), lambda g, o, i: (g, o, 0, 0)),
            scratch_shapes=[pltpu.VMEM((1, 1), jnp.float32)],
        ),
        compiler_params=pltpu.CompilerParams(
            dimension_semantics=("parallel", "parallel", "arbitrary"),
            vmem_limit_bytes=vmem_limit,
        ),
    )(preds3d, targets2d)
    return jnp.sum(out, axis=(1, 2, 3))                  # (G,) sums of per-row CE


def mrl_loss(nested_preds, targets, cm):
    """Pallas implementation of MRLLoss.forward.

    Accepts a list of per-granularity (B, C) logits (no stacking copy is made) or a
    pre-stacked (G, B, C) array.
    """
    # TODO(synk): torch CrossEntropyLoss extras (ignore_index, class weights,
    # label_smoothing) are not implemented; the module uses the defaults so semantics match.
    B = int(targets.shape[0])
    targets2d = targets.astype(jnp.int32).reshape(B, 1)

    if isinstance(nested_preds, (list, tuple)):
        # One pallas_call per granularity, straight off each (B, C) list element; the
        # leading unit dim reshape is layout-preserving (no copy).
        ce_sums = jnp.concatenate(
            [_ce_sums_pallas(p[None], targets2d) for p in nested_preds])
    else:
        preds = nested_preds if nested_preds.ndim == 3 else nested_preds[None]
        ce_sums = _ce_sums_pallas(preds, targets2d)

    cm_n = jnp.asarray(cm, dtype=jnp.float32)
    cm_n = cm_n / jnp.sum(cm_n)
    per_g_mean_ce = ce_sums / float(B)                   # mean over the FULL batch
    return jnp.sum(cm_n * per_g_mean_ce)                 # tiny weighted reduction


def _reference(nested_preds, targets, cm):
    """Pure-JAX reference (mirrors torch CrossEntropyLoss + weighted sum)."""
    cm_n = cm / cm.sum()
    losses = []
    for p in nested_preds:
        p = p.astype(jnp.float32)
        logz = jax.nn.logsumexp(p, axis=-1)
        tgt = jnp.take_along_axis(p, targets[:, None], axis=-1)[:, 0]
        losses.append(jnp.mean(logz - tgt))
    return jnp.sum(jnp.stack(losses) * cm_n)


if __name__ == "__main__":
    key = jax.random.PRNGKey(0)
    G, B, C = 4, 16, 256  # granularities, batch, classes

    keys = jax.random.split(key, 2 * G + 2)
    nested_preds = [jax.random.normal(keys[i], (B, C), dtype=jnp.float32)
                    for i in range(G)]
    targets = jax.random.randint(keys[G], (B,), 0, C, dtype=jnp.int32)
    cm = jnp.array([8.0, 4.0, 2.0, 1.0], dtype=jnp.float32)  # favor coarser granularities

    # 1) f32 list-of-preds path (no stacking copy anywhere).
    loss = jax.block_until_ready(mrl_loss(nested_preds, targets, cm))
    ref = _reference(nested_preds, targets, cm)
    assert jnp.allclose(loss, ref, rtol=1e-5, atol=1e-5), (loss, ref)

    # 2) bf16 logits path: half the HBM traffic, identical f32 math in-kernel.
    preds_bf16 = [p.astype(jnp.bfloat16) for p in nested_preds]
    loss_bf16 = jax.block_until_ready(mrl_loss(preds_bf16, targets, cm))
    ref_bf16 = _reference([p.astype(jnp.float32) for p in preds_bf16], targets, cm)
    assert jnp.allclose(loss_bf16, ref_bf16, rtol=1e-4, atol=1e-4), (loss_bf16, ref_bf16)

    # 3) pre-stacked (G, B, C) input: single pallas_call with a granularity grid axis.
    stacked = jnp.stack(nested_preds)
    loss_stk = jax.block_until_ready(mrl_loss(stacked, targets, cm))
    assert jnp.allclose(loss_stk, ref, rtol=1e-5, atol=1e-5), (loss_stk, ref)

    # 4) non-divisible batch: remainder tile is masked in-kernel.
    B2 = 20
    preds2 = [jax.random.normal(keys[G + 1 + i], (B2, C), dtype=jnp.float32)
              for i in range(G)]
    targets2 = jax.random.randint(keys[2 * G + 1], (B2,), 0, C, dtype=jnp.int32)
    loss2 = jax.block_until_ready(mrl_loss(preds2, targets2, cm))
    ref2 = _reference(preds2, targets2, cm)
    assert jnp.allclose(loss2, ref2, rtol=1e-5, atol=1e-5), (loss2, ref2)

    print("KERNEL_OK")
</pallas_src>

<mosaic_0001>
module attributes {stable_mosaic.version = 11 : i64} {
  func.func @_ce_sum_kernel(%arg0: i32, %arg1: i32, %arg2: i32, %arg3: memref<1x16x256xf32, #tpu.memory_space<vmem>>, %arg4: memref<16x1xi32, #tpu.memory_space<vmem>>, %arg5: memref<1x1x1x1xf32, #tpu.memory_space<vmem>>, %arg6: memref<1x1xf32, #tpu.memory_space<vmem>>) attributes {dimension_semantics = [#tpu.dimension_semantics<parallel>, #tpu.dimension_semantics<parallel>, #tpu.dimension_semantics<arbitrary>], iteration_bounds = array<i64: 1, 1, 1>, scalar_prefetch = 0 : i64, scratch_operands = 1 : i64, tpu.core_type = #tpu.core_type<tc>, window_params = [{transform_indices = @transform_0, window_bounds = array<i64: 1, 16, 256>}, {transform_indices = @transform_1, window_bounds = array<i64: 16, 1>}, {transform_indices = @transform_2, window_bounds = array<i64: 1, 1, 1, 1>}]} {
    %c0_i32 = arith.constant 0 : i32
    %0 = arith.cmpi eq, %arg2, %c0_i32 : i32
    %1 = arith.extui %0 : i1 to i32
    %c0_i32_0 = arith.constant 0 : i32
    %2 = arith.cmpi ne, %1, %c0_i32_0 : i32
    scf.if %2 {
      %cst_15 = arith.constant 0.000000e+00 : f32
      %33 = vector.broadcast %cst_15 : f32 to vector<1x1xf32>
      %c0_16 = arith.constant 0 : index
      %c0_17 = arith.constant 0 : index
      %34 = vector.load %arg6[%c0_16, %c0_17] : memref<1x1xf32, #tpu.memory_space<vmem>>, vector<1x1xf32>
      tpu.vector_store %arg6[%c0_16, %c0_17], %33 {strides = array<i32>} : memref<1x1xf32, #tpu.memory_space<vmem>>, vector<1x1xf32>,
    } else {
    }
    %c0 = arith.constant 0 : index
    %c0_1 = arith.constant 0 : index
    %c0_2 = arith.constant 0 : index
    %3 = vector.load %arg3[%c0, %c0_1, %c0_2] : memref<1x16x256xf32, #tpu.memory_space<vmem>>, vector<1x16x256xf32>
    %4 = vector.shape_cast %3 : vector<1x16x256xf32> to vector<16x256xf32>
    %cst = arith.constant dense<0xFF800000> : vector<16xf32>
    %5 = vector.multi_reduction <maximumf>, %4, %cst [1] : vector<16x256xf32> to vector<16xf32>
    %6 = vector.shape_cast %5 : vector<16xf32> to vector<16x1xf32>
    %7 = vector.broadcast %6 : vector<16x1xf32> to vector<16x256xf32>
    %8 = arith.subf %4, %7 : vector<16x256xf32>
    %9 = tpu.iota {dimensions = array<i32: 1>} : vector<16x256xi32>
    %c0_3 = arith.constant 0 : index
    %c0_4 = arith.constant 0 : index
    %10 = vector.load %arg4[%c0_3, %c0_4] : memref<16x1xi32, #tpu.memory_space<vmem>>, vector<16x1xi32>
    %11 = vector.broadcast %10 : vector<16x1xi32> to vector<16x256xi32>
    %12 = arith.cmpi eq, %9, %11 : vector<16x256xi32>
    %cst_5 = arith.constant 0.000000e+00 : f32
    %13 = vector.broadcast %cst_5 : f32 to vector<16x256xf32>
    %14 = arith.select %12, %8, %13 : vector<16x256xi1>, vector<16x256xf32>
    %cst_6 = arith.constant dense<0.000000e+00> : vector<16xf32>
    %15 = vector.multi_reduction <add>, %14, %cst_6 [1] : vector<16x256xf32> to vector<16xf32>
    %16 = vector.shape_cast %15 : vector<16xf32> to vector<16x1xf32>
    %17 = math.exp %8 : vector<16x256xf32>
    %cst_7 = arith.constant dense<0.000000e+00> : vector<16xf32>
    %18 = vector.multi_reduction <add>, %17, %cst_7 [1] : vector<16x256xf32> to vector<16xf32>
    %19 = vector.shape_cast %18 : vector<16xf32> to vector<16x1xf32>
    %20 = math.log %19 : vector<16x1xf32>
    %21 = arith.subf %20, %16 : vector<16x1xf32>
    %c0_8 = arith.constant 0 : index
    %c0_9 = arith.constant 0 : index
    %22 = vector.load %arg6[%c0_8, %c0_9] : memref<1x1xf32, #tpu.memory_space<vmem>>, vector<1x1xf32>
    %23 = vector.shape_cast %21 : vector<16x1xf32> to vector<1x16x1xf32>
    %cst_10 = arith.constant dense<0.000000e+00> : vector<1xf32>
    %24 = vector.multi_reduction <add>, %23, %cst_10 [1, 2] : vector<1x16x1xf32> to vector<1xf32>
    %25 = vector.shape_cast %24 : vector<1xf32> to vector<1x1x1xf32>
    %26 = vector.extract %25[0, 0, 0] : f32 from vector<1x1x1xf32>
    %27 = vector.broadcast %26 : f32 to vector<1x1xf32>
    %28 = arith.addf %22, %27 : vector<1x1xf32>
    %c0_11 = arith.constant 0 : index
    %c0_12 = arith.constant 0 : index
    %29 = vector.load %arg6[%c0_11, %c0_12] : memref<1x1xf32, #tpu.memory_space<vmem>>, vector<1x1xf32>
    tpu.vector_store %arg6[%c0_11, %c0_12], %28 {strides = array<i32>} : memref<1x1xf32, #tpu.memory_space<vmem>>, vector<1x1xf32>,
    %c0_i32_13 = arith.constant 0 : i32
    %30 = arith.cmpi eq, %arg2, %c0_i32_13 : i32
    %31 = arith.extui %30 : i1 to i32
    %c0_i32_14 = arith.constant 0 : i32
    %32 = arith.cmpi ne, %31, %c0_i32_14 : i32
    scf.if %32 {
      %c0_15 = arith.constant 0 : index
      %c0_16 = arith.constant 0 : index
      %33 = vector.load %arg6[%c0_15, %c0_16] : memref<1x1xf32, #tpu.memory_space<vmem>>, vector<1x1xf32>
      %c0_17 = arith.constant 0 : index
      %c0_18 = arith.constant 0 : index
      %c0_19 = arith.constant 0 : index
      %c0_20 = arith.constant 0 : index
      %34 = vector.load %arg5[%c0_17, %c0_18, %c0_19, %c0_20] : memref<1x1x1x1xf32, #tpu.memory_space<vmem>>, vector<1x1x1x1xf32>
      %35 = vector.shape_cast %34 : vector<1x1x1x1xf32> to vector<1x1xf32>
      %36 = vector.shape_cast %33 : vector<1x1xf32> to vector<1x1x1x1xf32>
      tpu.vector_store %arg5[%c0_17, %c0_18, %c0_19, %c0_20], %36 {strides = array<i32>} : memref<1x1x1x1xf32, #tpu.memory_space<vmem>>, vector<1x1x1x1xf32>,
    } else {
    }
    return
  }
  func.func @transform_0(%arg0: i32, %arg1: i32, %arg2: i32) -> (i32, i32, i32) {
    %c1_i32 = arith.constant 1 : i32
    %0 = arith.muli %arg1, %c1_i32 : i32
    %1 = arith.addi %0, %arg2 : i32
    %c0_i32 = arith.constant 0 : i32
    %c0_i32_0 = arith.constant 0 : i32
    return %arg0, %1, %c0_i32 : i32, i32, i32
  }
  func.func @transform_1(%arg0: i32, %arg1: i32, %arg2: i32) -> (i32, i32) {
    %c1_i32 = arith.constant 1 : i32
    %0 = arith.muli %arg1, %c1_i32 : i32
    %1 = arith.addi %0, %arg2 : i32
    %c0_i32 = arith.constant 0 : i32
    %c0_i32_0 = arith.constant 0 : i32
    return %1, %c0_i32 : i32, i32
  }
  func.func @transform_2(%arg0: i32, %arg1: i32, %arg2: i32) -> (i32, i32, i32, i32) {
    %c0_i32 = arith.constant 0 : i32
    %c0_i32_0 = arith.constant 0 : i32
    %c0_i32_1 = arith.constant 0 : i32
    return %arg0, %arg1, %c0_i32, %c0_i32_0 : i32, i32, i32, i32
  }
}

</mosaic_0001>

<llo_original>
// kernel: tpu_custom_call.1
$region0: #{tpu_custom_call.1}
  #allocation0 [shape = 'u32[]', space=smem, size = 0x4, offset = 0x4, fixed_abs, tag = 'smem constant byte address 0x4 - core index']
  #allocation1 [shape = 'u32[72,128]{1,0:T(1,128)}', space=vmem, size = 0x9000, scoped, tag = 'internal scratch']
  #allocation2 [shape = 'f32[1,1]{1,0:T(1,128)}', space=vmem, size = 0x200, scoped, tag = 'scratch operand']
  %s0 = inlined_call_operand.hbm [shape: f32[1,16,256], index: 0, kind: input, shape index: {}]
  %s1 = inlined_call_operand.vmem [shape: s32[16,1], index: 1, kind: input, shape index: {}]
  %s2 = inlined_call_operand.hbm [shape: f32[1,1,1,1], index: 2, kind: output, shape index: {}]
  %s3 = sld [smem:[#allocation0]]
  $region30: #{tpu_custom_call.1} parent=0
    _
  %s5 = ssub.s32 1, %s3
  %s6 = scalar_select 0, %s5, %s3
  $region1: #{tpu_custom_call.1} parent=0
    #allocation3 [shape = 'u8[16384]{0}', space=vmem, size = 0x4000, scoped, tag = 'input window, operand 0, single buffered']
    #allocation4 [shape = 's32[1]{0}', space=sflag, size = 0x4, scoped, tag = 'scoped memory for tpu_custom_call.1']
    #allocation5 [shape = 's32[1]{0}', space=sflag, size = 0x4, scoped, tag = 'scoped memory for tpu_custom_call.1']
    #allocation6 [shape = 'u8[512]{0}', space=vmem, size = 0x400, scoped, tag = 'output window, operand 0, single buffered']
    %7 = vsyncpa [#allocation4], 0
    %8 = vsyncpa [#allocation5], 0
    // Predicated region
    $region2: #{tpu_custom_call.1} parent=1 // pred_check
      _
    $region3: #{tpu_custom_call.1} parent=1 // pred_check_branch
      %10 = sbr.rel (0) target = $region5
    $region4: #{tpu_custom_call.1} parent=1 // pred_region
      %s11 = sadd.s32 0, 0
      %s12 = smul.u32 2, %s11
      %14 = vsyncadd [#allocation4], 0
      %s15 = smul.addr %s12, 2
      %s16 = smul.addr %s15, 8
      %s17 = scalar_lea.hbm %s0, %s16
      %s18 = sshll.u32 %s17, 4
      %s19 = int_to_ptr.hbm [resolvable:$true] %s18
      %s20 = sshll.u32 [#allocation3], 4
      %s21 = int_to_ptr.vmem [resolvable:$true] %s20
      %26 = dma.hbm_to_vmem [thread:$0]  %s19, 512, %s21, [#allocation4], 256, 256, 16
    $region5: #{tpu_custom_call.1} parent=1 // pred_fallthru
      _
    // Predicated region
    $region6: #{tpu_custom_call.1} parent=1 // pred_check
      _
    $region7: #{tpu_custom_call.1} parent=1 // pred_check_branch
      %28 = sbr.rel (0) target = $region9
    $region8: #{tpu_custom_call.1} parent=1 // pred_region
      %s29 = sadd.s32 0, 0
      %s30 = smul.u32 2, %s29
      %p31 = scmp.lt.s32.totalorder %s30, 1
      %s32 = scalar_select %p31, %s30, 1
      %s33 = smul.addr %s32, 8
      %s34 = scalar_lea.vmem %s1, %s33
      %s35 = sadd.s32 0, 0
      %s36 = smul.u32 2, %s35
    $region9: #{tpu_custom_call.1} parent=1 // pred_fallthru
      _
    // Predicated region
    $region10: #{tpu_custom_call.1} parent=1 // pred_check
      _
    $region11: #{tpu_custom_call.1} parent=1 // pred_check_branch
      %38 = sbr.rel (0) target = $region13
    $region12: #{tpu_custom_call.1} parent=1 // pred_region
      %40 = dma.done [#allocation4], 512
    $region13: #{tpu_custom_call.1} parent=1 // pred_fallthru
      _
    %s41 = sadd.s32 0, 0
    %s42 = smul.u32 2, %s41
    %p43 = scmp.lt.s32.totalorder %s42, 1
    %s44 = scalar_select %p43, %s42, 1
    %s45 = smul.addr %s44, 8
    %s46 = scalar_lea.vmem %s1, %s45
    %s47 = sadd.s32 0, 0
    %s48 = smul.u32 2, %s47
    %s49 = sadd.s32 0, 0
    %s50 = smul.u32 2, %s49
    %p51 = scmp.lt.s32.totalorder %s50, 1
    %s52 = scalar_select %p51, %s50, 1
    %s53 = smul.addr %s52, 8
    %s54 = scalar_lea.vmem %s1, %s53
    %s55 = sadd.s32 0, 0
    %s56 = smul.u32 2, %s55
    %p57 = scmp.eq.s32.totalorder 0, 0
    // Predicated region
    $region14: #{tpu_custom_call.1} parent=1 // pred_check
      %p58 = pneg %p57
    $region15: #{tpu_custom_call.1} parent=1 // pred_check_branch
      %60 = sbr.rel (%p58) target = $region17
    $region16: #{tpu_custom_call.1} parent=1 // pred_region
      %vm61 = vcmask 0
      %62 = vst.msk [vmem:[#allocation2] sm:$0x1] %vm61, 0.0
    $region17: #{tpu_custom_call.1} parent=1 // pred_fallthru
      _
    %v63 = vld [vmem:[#allocation3] sm:$0xff]
    %v64 = vld [vmem:[#allocation3 + $0x8] sm:$0xff]
    %v65 = vld [vmem:[#allocation3 + $0x10] sm:$0xff]
    %v66 = vld [vmem:[#allocation3 + $0x18] sm:$0xff]
    %v67 = vmax.f32 %v63, %v64
    %68 = vmax.xlane.f32.xlu0 %v67
    %v69 = vpop.xlane.xlu0 %68
    %v70 = vmax.f32 %v65, %v66
    %71 = vmax.xlane.f32.xlu0 %v70
    %v72 = vpop.xlane.xlu0 %71
    %v73 = vsub.f32 %v63, %v69
    %v74 = vsub.f32 %v64, %v69
    %v75 = vsub.f32 %v65, %v72
    %v76 = vsub.f32 %v66, %v72
    %v77 = vlaneseq
    %v78 = vand.u32 %v77, 127
    %v79 = vadd.s32 %v78, 128
    %v80 = vld [vmem:[%s54] sm:$0xff]
    %v81 = vld [vmem:[%s54 + $0x8] sm:$0xff]
    %82 = vset.pattern.permute.xlu0 0
    %83 = vperm.xlu0 %82, %v80
    %v84 = vpop.permute.xlu0 %83
    %85 = vset.pattern.permute.xlu0 0
    %86 = vperm.xlu0 %85, %v81
    %v87 = vpop.permute.xlu0 %86
    %vm88 = vcmp.eq.s32.totalorder %v78, %v84
    %vm89 = vcmp.eq.s32.totalorder %v79, %v84
    %vm90 = vcmp.eq.s32.totalorder %v78, %v87
    %vm91 = vcmp.eq.s32.totalorder %v79, %v87
    %v92 = vsel %vm88, %v73, 0.0
    %v93 = vsel %vm89, %v74, 0.0
    %v94 = vsel %vm90, %v75, 0.0
    %v95 = vsel %vm91, %v76, 0.0
    %v96 = vadd.f32 %v92, %v93
    %97 = vadd.xlane.f32.xlu0 %v96
    %v98 = vpop.xlane.xlu0 %97
    %v99 = vadd.f32 %v94, %v95
    %100 = vadd.xlane.f32.xlu0 %v99
    %v101 = vpop.xlane.xlu0 %100
    %v102 = vmul.f32 %v73, 1.442695
    %v103 = vpow.pop %v102
    %v104 = vmul.f32 %v74, 1.442695
    %v105 = vpow.pop %v104
    %v106 = vmul.f32 %v75, 1.442695
    %v107 = vpow.pop %v106
    %v108 = vmul.f32 %v76, 1.442695
    %v109 = vpow.pop %v108
    %v110 = vadd.f32 %v103, %v105
    %111 = vadd.xlane.f32.xlu0 %v110
    %v112 = vpop.xlane.xlu0 %111
    %v113 = vadd.f32 %v107, %v109
    %114 = vadd.xlane.f32.xlu0 %v113
    %v115 = vpop.xlane.xlu0 %114
    %v116 = vlog2.pop %v112
    %v117 = vmul.f32 %v116, 0.6931472
    %v118 = vlog2.pop %v115
    %v119 = vmul.f32 %v118, 0.6931472
    %v120 = vsub.f32 %v117, %v98
    %v121 = vsub.f32 %v119, %v101
    %v122 = vld [vmem:[#allocation2] sm:$0x1]
    %vm123 = vcmask 7168
    %v124 = vsel %vm123, %v120, 0.0
    %v125 = vsel %vm123, %v121, 0.0
    %v126 = vadd.f32 %v124, %v125
    %127 = vadd.xlane.f32.xlu0 %v126
    %v128 = vpop.xlane.xlu0 %127
    %v129 = vrot.slane %v128, 4
    %v130 = vadd.f32 %v128, %v129
    %v131 = vrot.slane %v130, 2
    %v132 = vadd.f32 %v130, %v131
    %v133 = vrot.slane %v132, 1
    %v134 = vadd.f32 %v132, %v133
    %s135 = vtos %v134
    %v136 = vstv %s135
    %v137 = vadd.f32 %v122, %v136
    %vm138 = vcmask 0
    %139 = vst.msk [vmem:[#allocation2] sm:$0x1] %vm138, %v137
    // Predicated region
    $region18: #{tpu_custom_call.1} parent=1 // pred_check
      %p140 = pneg %p57
    $region19: #{tpu_custom_call.1} parent=1 // pred_check_branch
      %142 = sbr.rel (%p140) target = $region21
    $region20: #{tpu_custom_call.1} parent=1 // pred_region
      %v143 = vld [vmem:[#allocation2] sm:$0x1]
      %144 = vst.msk [vmem:[#allocation6] sm:$0x1] %vm138, %v143
    $region21: #{tpu_custom_call.1} parent=1 // pred_fallthru
      _
    // Predicated region
    $region22: #{tpu_custom_call.1} parent=1 // pred_check
      _
    $region23: #{tpu_custom_call.1} parent=1 // pred_check_branch
      %146 = sbr.rel (0) target = $region25
    $region24: #{tpu_custom_call.1} parent=1 // pred_region
      %148 = vsyncadd [#allocation5], 0
      %s150 = sshll.u32 [#allocation6], 4
      %s151 = int_to_ptr.vmem [resolvable:$true] %s150
      %s152 = sshll.u32 %s2, 4
      %s153 = int_to_ptr.hbm [resolvable:$true] %s152
      %155 = dma.vmem_to_hbm [thread:$0]  %s151, 16, %s153, [#allocation5]
    $region25: #{tpu_custom_call.1} parent=1 // pred_fallthru
      _
    // Predicated region
    $region26: #{tpu_custom_call.1} parent=1 // pred_check
      _
    $region27: #{tpu_custom_call.1} parent=1 // pred_check_branch
      %157 = sbr.rel (0) target = $region29
    $region28: #{tpu_custom_call.1} parent=1 // pred_region
      %159 = dma.done [#allocation5], 16
    $region29: #{tpu_custom_call.1} parent=1 // pred_fallthru
      _
    %160 = vsyncpa [#allocation4], 1
    %161 = vsyncpa [#allocation5], 1

</llo_original>
